<compile_context>
chip_gen: v7x
topology: tpu7x:2x2x1
jax: 0.10.0
libtpu: 0.0.40
codegen_flags: <defaults>
</compile_context>

<pallas_src>
import functools

import jax
import jax.numpy as jnp
from jax.experimental import pallas as pl
from jax.experimental.pallas import tpu as pltpu


def _round_up(x, m):
    return (x + m - 1) // m * m


def _vmem_target_bytes():
    """Generation-aware VMEM budget: leave headroom under physical capacity."""
    try:
        cap = int(pltpu.get_tpu_info().vmem_capacity_bytes)
    except Exception:
        cap = 64 << 20  # conservative (v7x-sized) fallback
    if cap >= (96 << 20):
        return 100 << 20  # v5e / v6e: 128 MiB physical
    return 56 << 20       # v7x: 64 MiB physical


def _highway_kernel(x_ref, w_ref, b_ref, o_ref):
    x = x_ref[...]                         # (tn, e), native dtype
    e = o_ref.shape[-1]
    e_pad = w_ref.shape[-1] // 2

    # MXU operands in the weight's dtype (bf16 on the fast path), f32 accumulate.
    xm = x if x.dtype == w_ref.dtype else x.astype(w_ref.dtype)
    y = jnp.dot(xm, w_ref[...], preferred_element_type=jnp.float32)
    y = y + b_ref[...].astype(jnp.float32)            # (1, 2*E_pad) broadcast

    proj = jnp.maximum(y[:, :e], 0.0)                 # relu(proj_lin), real cols
    gate = jax.nn.sigmoid(y[:, e_pad:e_pad + e])      # sigmoid(gate_lin)

    xf = x.astype(jnp.float32)
    out = gate * (proj - xf) + xf                     # gated residual (1 fewer mul)
    o_ref[...] = out.astype(o_ref.dtype)


def prepare_highway_params(w_proj, b_proj, w_gate, b_gate, mxu_dtype=jnp.bfloat16):
    """One-time prep outside the hot path: transpose torch-layout (out, in)
    weights, fuse proj|gate along the output axis, pad each half's output
    columns to a lane multiple (128), and optionally store in bf16 for the MXU.
    The contraction dim is left at the true e so x never needs padding."""
    e = w_proj.shape[0]
    e_pad = _round_up(e, 128)
    wdt = w_proj.dtype if mxu_dtype is None else mxu_dtype

    wp = jnp.zeros((e, e_pad), wdt).at[:, :e].set(w_proj.T.astype(wdt))
    wg = jnp.zeros((e, e_pad), wdt).at[:, :e].set(w_gate.T.astype(wdt))
    w_fused = jnp.concatenate([wp, wg], axis=1)                    # (e, 2*E_pad)

    bp = jnp.zeros((e_pad,), jnp.float32).at[:e].set(b_proj.astype(jnp.float32))
    bg = jnp.zeros((e_pad,), jnp.float32).at[:e].set(b_gate.astype(jnp.float32))
    b_fused = jnp.concatenate([bp, bg]).reshape(1, 2 * e_pad)      # (1, 2*E_pad)
    return w_fused, b_fused


@functools.partial(jax.jit, static_argnames=("single_buffer_weights",))
def _highway_forward_2d(x, w_fused, b_fused, single_buffer_weights=True):
    n, e = x.shape
    two_e_pad = w_fused.shape[1]
    assert w_fused.shape[0] == e, "w_fused must be (e, 2*E_pad)"

    x_bytes = x.dtype.itemsize
    w_bytes = w_fused.dtype.itemsize

    # Dtype-aware sublane granule for the row tile (8 f32 / 16 bf16 / 32 i8).
    sublane = max(8, 32 // x_bytes)

    vmem_target = _vmem_target_bytes()

    def _budget(tn):
        io = 2 * (2 * tn * e * x_bytes)              # x + out blocks, double-buffered
        w = e * two_e_pad * w_bytes                  # resident weight, single-buffered
        b = two_e_pad * 4                            # resident bias
        tmp = tn * two_e_pad * 4 + 2 * tn * e * 4    # y + xf/out f32 live set
        return io + w + b + tmp

    # Aim for >= 2 grid steps (v7x megacore) when N allows; cap the row tile.
    tile_n = min(512, _round_up(max((n + 1) // 2, 1), sublane))
    tile_n = max(tile_n, sublane)
    while tile_n > sublane and _budget(tile_n) > vmem_target:
        tile_n = max(sublane, _round_up(tile_n // 2, sublane))

    grid_n = -(-n // tile_n)  # ragged last block: OOB reads unused, writes masked
    vmem_limit = int(min(max(_budget(tile_n) + (4 << 20), 32 << 20), vmem_target))

    cost = pl.CostEstimate(
        flops=2 * n * e * two_e_pad,
        transcendentals=n * e,                              # sigmoid exp
        bytes_accessed=(2 * n * e * x_bytes                 # x in + out
                        + e * two_e_pad * w_bytes + two_e_pad * 4),
    )

    spec_kwargs = {}
    if single_buffer_weights:
        # Constant index_map -> single buffer is enough; halves weight VMEM.
        spec_kwargs = dict(pipeline_mode=pl.Buffered(1))

    return pl.pallas_call(
        _highway_kernel,
        out_shape=jax.ShapeDtypeStruct((n, e), x.dtype),
        grid_spec=pl.GridSpec(
            grid=(grid_n,),
            in_specs=[
                pl.BlockSpec((tile_n, e), lambda i: (i, 0)),                    # x tile
                pl.BlockSpec((e, two_e_pad), lambda i: (0, 0), **spec_kwargs),  # fused W
                pl.BlockSpec((1, two_e_pad), lambda i: (0, 0), **spec_kwargs),  # fused b
            ],
            out_specs=pl.BlockSpec((tile_n, e), lambda i: (i, 0)),
        ),
        compiler_params=pltpu.CompilerParams(
            dimension_semantics=("parallel",),
            vmem_limit_bytes=vmem_limit,
        ),
        cost_estimate=cost,
    )(x, w_fused, b_fused)


def highway_forward(x, w_fused, b_fused):
    """Highway forward. x: (..., e). Returns same shape/dtype as x."""
    e = x.shape[-1]
    x2 = x.reshape(-1, e)
    try:
        out2 = _highway_forward_2d(x2, w_fused, b_fused, single_buffer_weights=True)
    except Exception:
        # Fallback if this Pallas build rejects pl.Buffered(1) single-buffering.
        out2 = _highway_forward_2d(x2, w_fused, b_fused, single_buffer_weights=False)
    return out2.reshape(x.shape)


def highway_reference(x, w_proj, b_proj, w_gate, b_gate):
    proj = jax.nn.relu(x @ w_proj.T + b_proj)
    gate = jax.nn.sigmoid(x @ w_gate.T + b_gate)
    return gate * proj + (1.0 - gate) * x


if __name__ == "__main__":
    key = jax.random.PRNGKey(0)
    N, E = 8, 32  # word count x embedding size e (small test shape)

    k1, k2, k3, k4, k5 = jax.random.split(key, 5)
    x = jax.random.normal(k1, (N, E), dtype=jnp.float32)
    # Deterministic "Linear(e, e)" parameters (torch layout: (out, in)).
    bound = 1.0 / (E ** 0.5)
    w_proj = jax.random.uniform(k2, (E, E), jnp.float32, -bound, bound)
    b_proj = jax.random.uniform(k3, (E,), jnp.float32, -bound, bound)
    w_gate = jax.random.uniform(k4, (E, E), jnp.float32, -bound, bound)
    b_gate = jax.random.uniform(k5, (E,), jnp.float32, -bound, bound)

    ref = highway_reference(x, w_proj, b_proj, w_gate, b_gate)

    # Fast path: bf16 MXU operands, f32 accumulation (default).
    w_bf16, b_fused = prepare_highway_params(w_proj, b_proj, w_gate, b_gate)
    out = jax.block_until_ready(highway_forward(x, w_bf16, b_fused))
    assert out.shape == (N, E) and out.dtype == x.dtype
    assert jnp.allclose(out, ref, atol=5e-2, rtol=5e-2), "bf16-MXU path mismatch"

    # Exact-dtype path (f32 MXU operands) for a tight numerical check.
    w_f32, b_f32 = prepare_highway_params(w_proj, b_proj, w_gate, b_gate, mxu_dtype=None)
    out_f32 = jax.block_until_ready(highway_forward(x, w_f32, b_f32))
    assert jnp.allclose(out_f32, ref, atol=1e-5, rtol=1e-5), "f32 path mismatch"

    # Ragged-N path (grid of 2, masked last block) to exercise the tiling.
    N2 = 13
    x_r = jax.random.normal(jax.random.PRNGKey(1), (N2, E), dtype=jnp.float32)
    ref_r = highway_reference(x_r, w_proj, b_proj, w_gate, b_gate)
    out_r = jax.block_until_ready(highway_forward(x_r, w_bf16, b_fused))
    assert out_r.shape == (N2, E)
    assert jnp.allclose(out_r, ref_r, atol=5e-2, rtol=5e-2), "ragged-N path mismatch"

    print("KERNEL_OK")
</pallas_src>

<mosaic_0001>
module attributes {stable_mosaic.version = 11 : i64} {
  func.func @_highway_kernel(%arg0: i32, %arg1: memref<8x32xf32, #tpu.memory_space<vmem>>, %arg2: memref<32x256xbf16, #tpu.memory_space<vmem>>, %arg3: memref<1x256xf32, #tpu.memory_space<vmem>>, %arg4: memref<8x32xf32, #tpu.memory_space<vmem>>) attributes {dimension_semantics = [#tpu.dimension_semantics<parallel>], iteration_bounds = array<i64: 1>, scalar_prefetch = 0 : i64, scratch_operands = 0 : i64, tpu.core_type = #tpu.core_type<tc>, window_params = [{transform_indices = @transform_0, window_bounds = array<i64: 8, 32>}, {pipeline_mode = #tpu.pipeline_mode<synchronous>, transform_indices = @transform_1, window_bounds = array<i64: 32, 256>}, {pipeline_mode = #tpu.pipeline_mode<synchronous>, transform_indices = @transform_2, window_bounds = array<i64: 1, 256>}, {transform_indices = @transform_3, window_bounds = array<i64: 8, 32>}]} {
    %c0 = arith.constant 0 : index
    %c0_0 = arith.constant 0 : index
    %0 = vector.load %arg1[%c0, %c0_0] : memref<8x32xf32, #tpu.memory_space<vmem>>, vector<8x32xf32>
    %1 = arith.truncf %0 : vector<8x32xf32> to vector<8x32xbf16>
    %c0_1 = arith.constant 0 : index
    %c0_2 = arith.constant 0 : index
    %2 = vector.load %arg2[%c0_1, %c0_2] : memref<32x256xbf16, #tpu.memory_space<vmem>>, vector<32x256xbf16>
    %cst = arith.constant dense<0.000000e+00> : vector<8x256xf32>
    %3 = tpu.matmul %1, %2, %cst {dimension_numbers = #tpu.dot_dimension_numbers<[1], [0], [0], [1], [0, 0, 1, 1], [], []>} : vector<8x32xbf16>, vector<32x256xbf16>, vector<8x256xf32> -> vector<8x256xf32>
    %c0_3 = arith.constant 0 : index
    %c0_4 = arith.constant 0 : index
    %4 = vector.load %arg3[%c0_3, %c0_4] : memref<1x256xf32, #tpu.memory_space<vmem>>, vector<1x256xf32>
    %5 = vector.broadcast %4 : vector<1x256xf32> to vector<8x256xf32>
    %6 = arith.addf %3, %5 : vector<8x256xf32>
    %7 = vector.extract_strided_slice %6 {offsets = [0, 0], sizes = [8, 32], strides = [1, 1]} : vector<8x256xf32> to vector<8x32xf32>
    %cst_5 = arith.constant 0.000000e+00 : f32
    %8 = vector.broadcast %cst_5 : f32 to vector<8x32xf32>
    %9 = arith.maximumf %7, %8 : vector<8x32xf32>
    %10 = vector.extract_strided_slice %6 {offsets = [0, 128], sizes = [8, 32], strides = [1, 1]} : vector<8x256xf32> to vector<8x32xf32>
    %11 = arith.negf %10 : vector<8x32xf32>
    %12 = math.exp %11 : vector<8x32xf32>
    %cst_6 = arith.constant 1.000000e+00 : f32
    %13 = vector.broadcast %cst_6 : f32 to vector<8x32xf32>
    %14 = arith.addf %13, %12 : vector<8x32xf32>
    %15 = arith.divf %13, %14 : vector<8x32xf32>
    %16 = arith.subf %9, %0 : vector<8x32xf32>
    %17 = arith.mulf %15, %16 : vector<8x32xf32>
    %18 = arith.addf %17, %0 : vector<8x32xf32>
    %c0_7 = arith.constant 0 : index
    %c0_8 = arith.constant 0 : index
    %19 = vector.load %arg4[%c0_7, %c0_8] : memref<8x32xf32, #tpu.memory_space<vmem>>, vector<8x32xf32>
    tpu.vector_store %arg4[%c0_7, %c0_8], %18 {strides = array<i32>} : memref<8x32xf32, #tpu.memory_space<vmem>>, vector<8x32xf32>,
    return
  }
  func.func @transform_0(%arg0: i32) -> (i32, i32) {
    %c0_i32 = arith.constant 0 : i32
    %c0_i32_0 = arith.constant 0 : i32
    return %arg0, %c0_i32 : i32, i32
  }
  func.func @transform_1(%arg0: i32) -> (i32, i32) {
    %c0_i32 = arith.constant 0 : i32
    %c0_i32_0 = arith.constant 0 : i32
    %c0_i32_1 = arith.constant 0 : i32
    return %c0_i32, %c0_i32_0 : i32, i32
  }
  func.func @transform_2(%arg0: i32) -> (i32, i32) {
    %c0_i32 = arith.constant 0 : i32
    %c0_i32_0 = arith.constant 0 : i32
    %c0_i32_1 = arith.constant 0 : i32
    return %c0_i32, %c0_i32_0 : i32, i32
  }
  func.func @transform_3(%arg0: i32) -> (i32, i32) {
    %c0_i32 = arith.constant 0 : i32
    %c0_i32_0 = arith.constant 0 : i32
    return %arg0, %c0_i32 : i32, i32
  }
}

module attributes {stable_mosaic.version = 11 : i64} {
  func.func @_highway_kernel(%arg0: i32, %arg1: memref<8x32xf32, #tpu.memory_space<vmem>>, %arg2: memref<32x256xbf16, #tpu.memory_space<vmem>>, %arg3: memref<1x256xf32, #tpu.memory_space<vmem>>, %arg4: memref<8x32xf32, #tpu.memory_space<vmem>>) attributes {dimension_semantics = [#tpu.dimension_semantics<parallel>], iteration_bounds = array<i64: 1>, scalar_prefetch = 0 : i64, scratch_operands = 0 : i64, tpu.core_type = #tpu.core_type<tc>, window_params = [{transform_indices = @transform_0, window_bounds = array<i64: 8, 32>}, {pipeline_mode = #tpu.pipeline_mode<synchronous>, transform_indices = @transform_1, window_bounds = array<i64: 32, 256>}, {pipeline_mode = #tpu.pipeline_mode<synchronous>, transform_indices = @transform_2, window_bounds = array<i64: 1, 256>}, {transform_indices = @transform_3, window_bounds = array<i64: 8, 32>}]} {
    %c0 = arith.constant 0 : index
    %c0_0 = arith.constant 0 : index
    %0 = vector.load %arg1[%c0, %c0_0] : memref<8x32xf32, #tpu.memory_space<vmem>>, vector<8x32xf32>
    %1 = arith.truncf %0 : vector<8x32xf32> to vector<8x32xbf16>
    %c0_1 = arith.constant 0 : index
    %c0_2 = arith.constant 0 : index
    %2 = vector.load %arg2[%c0_1, %c0_2] : memref<32x256xbf16, #tpu.memory_space<vmem>>, vector<32x256xbf16>
    %cst = arith.constant dense<0.000000e+00> : vector<8x256xf32>
    %3 = tpu.matmul %1, %2, %cst {dimension_numbers = #tpu.dot_dimension_numbers<[1], [0], [0], [1], [0, 0, 1, 1], [], []>} : vector<8x32xbf16>, vector<32x256xbf16>, vector<8x256xf32> -> vector<8x256xf32>
    %c0_3 = arith.constant 0 : index
    %c0_4 = arith.constant 0 : index
    %4 = vector.load %arg3[%c0_3, %c0_4] : memref<1x256xf32, #tpu.memory_space<vmem>>, vector<1x256xf32>
    %5 = vector.broadcast %4 : vector<1x256xf32> to vector<8x256xf32>
    %6 = arith.addf %3, %5 : vector<8x256xf32>
    %7 = vector.extract_strided_slice %6 {offsets = [0, 0], sizes = [8, 32], strides = [1, 1]} : vector<8x256xf32> to vector<8x32xf32>
    %cst_5 = arith.constant 0.000000e+00 : f32
    %8 = vector.broadcast %cst_5 : f32 to vector<8x32xf32>
    %9 = arith.maximumf %7, %8 : vector<8x32xf32>
    %10 = vector.extract_strided_slice %6 {offsets = [0, 128], sizes = [8, 32], strides = [1, 1]} : vector<8x256xf32> to vector<8x32xf32>
    %11 = arith.negf %10 : vector<8x32xf32>
    %12 = math.exp %11 : vector<8x32xf32>
    %cst_6 = arith.constant 1.000000e+00 : f32
    %13 = vector.broadcast %cst_6 : f32 to vector<8x32xf32>
    %14 = arith.addf %13, %12 : vector<8x32xf32>
    %15 = arith.divf %13, %14 : vector<8x32xf32>
    %16 = arith.subf %9, %0 : vector<8x32xf32>
    %17 = arith.mulf %15, %16 : vector<8x32xf32>
    %18 = arith.addf %17, %0 : vector<8x32xf32>
    %c0_7 = arith.constant 0 : index
    %c0_8 = arith.constant 0 : index
    %19 = vector.load %arg4[%c0_7, %c0_8] : memref<8x32xf32, #tpu.memory_space<vmem>>, vector<8x32xf32>
    tpu.vector_store %arg4[%c0_7, %c0_8], %18 {strides = array<i32>} : memref<8x32xf32, #tpu.memory_space<vmem>>, vector<8x32xf32>,
    return
  }
  func.func @transform_0(%arg0: i32) -> (i32, i32) {
    %c0_i32 = arith.constant 0 : i32
    %c0_i32_0 = arith.constant 0 : i32
    return %arg0, %c0_i32 : i32, i32
  }
  func.func @transform_1(%arg0: i32) -> (i32, i32) {
    %c0_i32 = arith.constant 0 : i32
    %c0_i32_0 = arith.constant 0 : i32
    %c0_i32_1 = arith.constant 0 : i32
    return %c0_i32, %c0_i32_0 : i32, i32
  }
  func.func @transform_2(%arg0: i32) -> (i32, i32) {
    %c0_i32 = arith.constant 0 : i32
    %c0_i32_0 = arith.constant 0 : i32
    %c0_i32_1 = arith.constant 0 : i32
    return %c0_i32, %c0_i32_0 : i32, i32
  }
  func.func @transform_3(%arg0: i32) -> (i32, i32) {
    %c0_i32 = arith.constant 0 : i32
    %c0_i32_0 = arith.constant 0 : i32
    return %arg0, %c0_i32 : i32, i32
  }
}

</mosaic_0001>

<llo_original>
// kernel: _highway_forward_2d.1
$region0: #{_highway_forward_2d.1}
  #allocation0 [shape = 'u32[]', space=smem, size = 0x4, offset = 0x4, fixed_abs, tag = 'smem constant byte address 0x4 - core index']
  #allocation1 [shape = 'u32[144,128]{1,0:T(1,128)}', space=vmem, size = 0x12000, scoped, tag = 'internal scratch']
  %s0 = inlined_call_operand.hbm [shape: f32[8,32], index: 0, kind: input, shape index: {}]
  %s1 = inlined_call_operand.hbm [shape: bf16[32,256], index: 1, kind: input, shape index: {}]
  %s2 = inlined_call_operand.vmem [shape: f32[1,256], index: 2, kind: input, shape index: {}]
  %s3 = inlined_call_operand.hbm [shape: f32[8,32], index: 3, kind: output, shape index: {}]
  %s4 = sld [smem:[#allocation0]]
  $region30: #{_highway_forward_2d.1} parent=0
    _
  %s6 = ssub.s32 1, %s4
  %s7 = scalar_select 0, %s6, %s4
  $region1: #{_highway_forward_2d.1} parent=0
    #allocation2 [shape = 'u8[4096]{0}', space=vmem, size = 0x1000, scoped, tag = 'input window, operand 0, single buffered']
    #allocation3 [shape = 's32[1]{0}', space=sflag, size = 0x4, scoped, tag = 'scoped memory for _highway_forward_2d.1']
    #allocation4 [shape = 's32[1]{0}', space=sflag, size = 0x4, scoped, tag = 'scoped memory for _highway_forward_2d.1']
    #allocation5 [shape = 'u8[16384]{0}', space=vmem, size = 0x4000, scoped, tag = 'input window, operand 1, single buffered']
    #allocation6 [shape = 's32[1]{0}', space=sflag, size = 0x4, scoped, tag = 'scoped memory for _highway_forward_2d.1']
    #allocation7 [shape = 'u8[4096]{0}', space=vmem, size = 0x1000, scoped, tag = 'output window, operand 0, single buffered']
    %8 = vsyncpa [#allocation3], 0
    %9 = vsyncpa [#allocation6], 0
    %10 = vsyncpa [#allocation4], 0
    // Predicated region
    $region2: #{_highway_forward_2d.1} parent=1 // pred_check
      _
    $region3: #{_highway_forward_2d.1} parent=1 // pred_check_branch
      %12 = sbr.rel (0) target = $region5
    $region4: #{_highway_forward_2d.1} parent=1 // pred_region
      %s14 = ssub.s32 128, 128
      %15 = vsyncadd [#allocation3], %s14
      %s17 = sshll.u32 [#allocation2], 4
      %s18 = int_to_ptr.vmem [resolvable:$true] %s17
      %20 = dma.hbm_to_vmem [thread:$0]  %s0, 128, %s18, [#allocation3]
    $region5: #{_highway_forward_2d.1} parent=1 // pred_fallthru
      _
    // Predicated region
    $region6: #{_highway_forward_2d.1} parent=1 // pred_check
      _
    $region7: #{_highway_forward_2d.1} parent=1 // pred_check_branch
      %22 = sbr.rel (0) target = $region9
    $region8: #{_highway_forward_2d.1} parent=1 // pred_region
      %s24 = ssub.s32 512, 512
      %25 = vsyncadd [#allocation6], %s24
      %s26 = sshll.u32 [#allocation5], 4
      %s27 = int_to_ptr.vmem [resolvable:$true] %s26
      %32 = dma.hbm_to_vmem [thread:$0]  %s1, 512, %s27, [#allocation6], 128, 128, 8
    $region9: #{_highway_forward_2d.1} parent=1 // pred_fallthru
      _
    // Predicated region
    $region10: #{_highway_forward_2d.1} parent=1 // pred_check
      _
    $region11: #{_highway_forward_2d.1} parent=1 // pred_check_branch
      %34 = sbr.rel (0) target = $region13
    $region12: #{_highway_forward_2d.1} parent=1 // pred_region
      _
    $region13: #{_highway_forward_2d.1} parent=1 // pred_fallthru
      _
    // Predicated region
    $region14: #{_highway_forward_2d.1} parent=1 // pred_check
      _
    $region15: #{_highway_forward_2d.1} parent=1 // pred_check_branch
      %36 = sbr.rel (0) target = $region17
    $region16: #{_highway_forward_2d.1} parent=1 // pred_region
      %37 = dma.done [#allocation3], 128
    $region17: #{_highway_forward_2d.1} parent=1 // pred_fallthru
      _
    // Predicated region
    $region18: #{_highway_forward_2d.1} parent=1 // pred_check
      _
    $region19: #{_highway_forward_2d.1} parent=1 // pred_check_branch
      %39 = sbr.rel (0) target = $region21
    $region20: #{_highway_forward_2d.1} parent=1 // pred_region
      %40 = dma.done [#allocation6], 512
    $region21: #{_highway_forward_2d.1} parent=1 // pred_fallthru
      _
    %v42 = vld [vmem:[#allocation2] sm:$0xff]
    %v43 = vpack.c.bf16 %v42, %v42
    %v44 = vld [vmem:[#allocation5] sm:$0xff]
    %v45 = vld [vmem:[#allocation5 + $0x8] sm:$0xff]
    %v46 = vld [vmem:[#allocation5 + $0x10] sm:$0xff]
    %v47 = vld [vmem:[#allocation5 + $0x18] sm:$0xff]
    %v48 = vld [vmem:[%s2] sm:$0x3]
    %v50 = vlaneseq
    %v51 = vshrl.u32 %v50, 7
    %v52 = vsub.s32 0, %v51
    %v53 = vrot.slane %v48, %v52
    %v54 = vlaneseq
    %v55 = vshrl.u32 %v54, 7
    %v56 = vsub.s32 1, %v55
    %v57 = vrot.slane %v48, %v56
    %v64 = vunpack.c.l.b16 %v44
    %v65 = vunpack.c.h.b16 %v44
    %v66 = vunpack.c.l.b16 %v45
    %v67 = vunpack.c.h.b16 %v45
    %v68 = vunpack.c.l.b16 %v46
    %v69 = vunpack.c.h.b16 %v46
    %v70 = vunpack.c.l.b16 %v47
    %v71 = vunpack.c.h.b16 %v47
    %v72 = vpack.c.b16 %v66, %v64
    %v73 = vpack.c.b16 %v67, %v65
    %v74 = vpack.c.b16 %v70, %v68
    %v75 = vpack.c.b16 %v71, %v69
    %vm80 = vcmask 261120
    %v82 = vsel %vm80, %v43, 0
    %84 = vmatprep.subr.bf16.mxu0 %v73
    %85 = vmatpush1.bf16.msra.mxu0 %v72
    %86 = vmatprep.subr.bf16.mxu0 %v75
    %87 = vmatpush1.bf16.msra.mxu0 %v74
    %88 = vmatprep.subr.bf16.mxu0 0
    %89 = vmatpush1.bf16.msra.mxu0 0
    %90 = vmatprep.subr.bf16.mxu0 0
    %91 = vmatpush1.bf16.msra.mxu0 0
    %92 = vmatprep.subr.bf16.mxu0 0
    %93 = vmatpush1.bf16.msra.mxu0 0
    %94 = vmatprep.subr.bf16.mxu0 0
    %95 = vmatpush1.bf16.msra.mxu0 0
    %96 = vmatprep.subr.bf16.mxu0 0
    %97 = vmatpush1.bf16.msra.mxu0 0
    %98 = vmatprep.subr.bf16.mxu0 0
    %99 = vmatpush1.bf16.msra.mxu0 0
    %100 = vmatprep.subr.bf16.mxu0 0
    %101 = vmatpush1.bf16.msra.mxu0 0
    %102 = vmatprep.subr.bf16.mxu0 0
    %103 = vmatpush1.bf16.msra.mxu0 0
    %104 = vmatprep.subr.bf16.mxu0 0
    %105 = vmatpush1.bf16.msra.mxu0 0
    %106 = vmatprep.subr.bf16.mxu0 0
    %107 = vmatpush1.bf16.msra.mxu0 0
    %108 = vmatprep.subr.bf16.mxu0 0
    %109 = vmatpush1.bf16.msra.mxu0 0
    %110 = vmatprep.subr.bf16.mxu0 0
    %111 = vmatpush1.bf16.msra.mxu0 0
    %112 = vmatprep.subr.bf16.mxu0 0
    %113 = vmatpush1.bf16.msra.mxu0 0
    %114 = vmatprep.subr.bf16.mxu0 0
    %115 = vmatpush1.bf16.msra.mxu0 0
    %116 = vmatprep.mubr.bf16.mxu0 0
    %117 = vmatmul.mubr.bf16.gmra.mrb[0].mxu0 %v82
    %v118 = vpop.f32.mrb[0].mxu0
    %v119 = vadd.f32 %v53, %v118
    %v120 = vpop.f32.mrb[0].mxu0
    %v121 = vadd.f32 %v57, %v120
    %v122 = vpop.f32.mrb[0].mxu0
    %v123 = vpop.f32.mrb[0].mxu0
    %124 = vdwg.mxu0
    %v125 = vmax.f32 %v119, 0.0
    %v126 = vxor.u32 %v121, 2147483648
    %v127 = vmul.f32 %v126, 1.442695
    %v128 = vpow.pop %v127
    %v129 = vadd.f32 %v128, 1.0
    %v130 = vrcp.pop %v129
    %v131 = vmul.f32 1.0, %v130
    %v132 = vsub.f32 %v125, %v42
    %v133 = vmul.f32 %v131, %v132
    %v134 = vadd.f32 %v133, %v42
    %135 = vst.msk [vmem:[#allocation7] sm:$0xff] %vm80, %v134
    // Predicated region
    $region22: #{_highway_forward_2d.1} parent=1 // pred_check
      _
    $region23: #{_highway_forward_2d.1} parent=1 // pred_check_branch
      %137 = sbr.rel (0) target = $region25
    $region24: #{_highway_forward_2d.1} parent=1 // pred_region
      %s139 = ssub.s32 128, 128
      %140 = vsyncadd [#allocation4], %s139
      %s142 = sshll.u32 [#allocation7], 4
      %s143 = int_to_ptr.vmem [resolvable:$true] %s142
      %145 = dma.vmem_to_hbm [thread:$0]  %s143, 128, %s3, [#allocation4]
    $region25: #{_highway_forward_2d.1} parent=1 // pred_fallthru
      _
    // Predicated region
    $region26: #{_highway_forward_2d.1} parent=1 // pred_check
      _
    $region27: #{_highway_forward_2d.1} parent=1 // pred_check_branch
      %147 = sbr.rel (0) target = $region29
    $region28: #{_highway_forward_2d.1} parent=1 // pred_region
      %148 = dma.done [#allocation4], 128
    $region29: #{_highway_forward_2d.1} parent=1 // pred_fallthru
      _
    %149 = vsyncpa [#allocation3], 1
    %150 = vsyncpa [#allocation6], 1
    %151 = vsyncpa [#allocation4], 1

// kernel: _highway_forward_2d.1
$region0: #{_highway_forward_2d.1}
  #allocation0 [shape = 'u32[]', space=smem, size = 0x4, offset = 0x4, fixed_abs, tag = 'smem constant byte address 0x4 - core index']
  #allocation1 [shape = 'u32[144,128]{1,0:T(1,128)}', space=vmem, size = 0x12000, scoped, tag = 'internal scratch']
  %s0 = inlined_call_operand.hbm [shape: f32[8,32], index: 0, kind: input, shape index: {}]
  %s1 = inlined_call_operand.hbm [shape: bf16[32,256], index: 1, kind: input, shape index: {}]
  %s2 = inlined_call_operand.vmem [shape: f32[1,256], index: 2, kind: input, shape index: {}]
  %s3 = inlined_call_operand.hbm [shape: f32[8,32], index: 3, kind: output, shape index: {}]
  %s4 = sld [smem:[#allocation0]]
  $region30: #{_highway_forward_2d.1} parent=0
    _
  %s6 = ssub.s32 1, %s4
  %s7 = scalar_select 0, %s6, %s4
  $region1: #{_highway_forward_2d.1} parent=0
    #allocation2 [shape = 'u8[4096]{0}', space=vmem, size = 0x1000, scoped, tag = 'input window, operand 0, single buffered']
    #allocation3 [shape = 's32[1]{0}', space=sflag, size = 0x4, scoped, tag = 'scoped memory for _highway_forward_2d.1']
    #allocation4 [shape = 's32[1]{0}', space=sflag, size = 0x4, scoped, tag = 'scoped memory for _highway_forward_2d.1']
    #allocation5 [shape = 'u8[16384]{0}', space=vmem, size = 0x4000, scoped, tag = 'input window, operand 1, single buffered']
    #allocation6 [shape = 's32[1]{0}', space=sflag, size = 0x4, scoped, tag = 'scoped memory for _highway_forward_2d.1']
    #allocation7 [shape = 'u8[4096]{0}', space=vmem, size = 0x1000, scoped, tag = 'output window, operand 0, single buffered']
    %8 = vsyncpa [#allocation3], 0
    %9 = vsyncpa [#allocation6], 0
    %10 = vsyncpa [#allocation4], 0
    // Predicated region
    $region2: #{_highway_forward_2d.1} parent=1 // pred_check
      _
    $region3: #{_highway_forward_2d.1} parent=1 // pred_check_branch
      %12 = sbr.rel (0) target = $region5
    $region4: #{_highway_forward_2d.1} parent=1 // pred_region
      %s14 = ssub.s32 128, 128
      %15 = vsyncadd [#allocation3], %s14
      %s17 = sshll.u32 [#allocation2], 4
      %s18 = int_to_ptr.vmem [resolvable:$true] %s17
      %20 = dma.hbm_to_vmem [thread:$0]  %s0, 128, %s18, [#allocation3]
    $region5: #{_highway_forward_2d.1} parent=1 // pred_fallthru
      _
    // Predicated region
    $region6: #{_highway_forward_2d.1} parent=1 // pred_check
      _
    $region7: #{_highway_forward_2d.1} parent=1 // pred_check_branch
      %22 = sbr.rel (0) target = $region9
    $region8: #{_highway_forward_2d.1} parent=1 // pred_region
      %s24 = ssub.s32 512, 512
      %25 = vsyncadd [#allocation6], %s24
      %s26 = sshll.u32 [#allocation5], 4
      %s27 = int_to_ptr.vmem [resolvable:$true] %s26
      %32 = dma.hbm_to_vmem [thread:$0]  %s1, 512, %s27, [#allocation6], 128, 128, 8
    $region9: #{_highway_forward_2d.1} parent=1 // pred_fallthru
      _
    // Predicated region
    $region10: #{_highway_forward_2d.1} parent=1 // pred_check
      _
    $region11: #{_highway_forward_2d.1} parent=1 // pred_check_branch
      %34 = sbr.rel (0) target = $region13
    $region12: #{_highway_forward_2d.1} parent=1 // pred_region
      _
    $region13: #{_highway_forward_2d.1} parent=1 // pred_fallthru
      _
    // Predicated region
    $region14: #{_highway_forward_2d.1} parent=1 // pred_check
      _
    $region15: #{_highway_forward_2d.1} parent=1 // pred_check_branch
      %36 = sbr.rel (0) target = $region17
    $region16: #{_highway_forward_2d.1} parent=1 // pred_region
      %37 = dma.done [#allocation3], 128
    $region17: #{_highway_forward_2d.1} parent=1 // pred_fallthru
      _
    // Predicated region
    $region18: #{_highway_forward_2d.1} parent=1 // pred_check
      _
    $region19: #{_highway_forward_2d.1} parent=1 // pred_check_branch
      %39 = sbr.rel (0) target = $region21
    $region20: #{_highway_forward_2d.1} parent=1 // pred_region
      %40 = dma.done [#allocation6], 512
    $region21: #{_highway_forward_2d.1} parent=1 // pred_fallthru
      _
    %v42 = vld [vmem:[#allocation2] sm:$0xff]
    %v43 = vpack.c.bf16 %v42, %v42
    %v44 = vld [vmem:[#allocation5] sm:$0xff]
    %v45 = vld [vmem:[#allocation5 + $0x8] sm:$0xff]
    %v46 = vld [vmem:[#allocation5 + $0x10] sm:$0xff]
    %v47 = vld [vmem:[#allocation5 + $0x18] sm:$0xff]
    %v48 = vld [vmem:[%s2] sm:$0x3]
    %v50 = vlaneseq
    %v51 = vshrl.u32 %v50, 7
    %v52 = vsub.s32 0, %v51
    %v53 = vrot.slane %v48, %v52
    %v54 = vlaneseq
    %v55 = vshrl.u32 %v54, 7
    %v56 = vsub.s32 1, %v55
    %v57 = vrot.slane %v48, %v56
    %v64 = vunpack.c.l.b16 %v44
    %v65 = vunpack.c.h.b16 %v44
    %v66 = vunpack.c.l.b16 %v45
    %v67 = vunpack.c.h.b16 %v45
    %v68 = vunpack.c.l.b16 %v46
    %v69 = vunpack.c.h.b16 %v46
    %v70 = vunpack.c.l.b16 %v47
    %v71 = vunpack.c.h.b16 %v47
    %v72 = vpack.c.b16 %v66, %v64
    %v73 = vpack.c.b16 %v67, %v65
    %v74 = vpack.c.b16 %v70, %v68
    %v75 = vpack.c.b16 %v71, %v69
    %vm80 = vcmask 261120
    %v82 = vsel %vm80, %v43, 0
    %84 = vmatprep.subr.bf16.mxu0 %v73
    %85 = vmatpush1.bf16.msra.mxu0 %v72
    %86 = vmatprep.subr.bf16.mxu0 %v75
    %87 = vmatpush1.bf16.msra.mxu0 %v74
    %88 = vmatprep.subr.bf16.mxu0 0
    %89 = vmatpush1.bf16.msra.mxu0 0
    %90 = vmatprep.subr.bf16.mxu0 0
    %91 = vmatpush1.bf16.msra.mxu0 0
    %92 = vmatprep.subr.bf16.mxu0 0
    %93 = vmatpush1.bf16.msra.mxu0 0
    %94 = vmatprep.subr.bf16.mxu0 0
    %95 = vmatpush1.bf16.msra.mxu0 0
    %96 = vmatprep.subr.bf16.mxu0 0
    %97 = vmatpush1.bf16.msra.mxu0 0
    %98 = vmatprep.subr.bf16.mxu0 0
    %99 = vmatpush1.bf16.msra.mxu0 0
    %100 = vmatprep.subr.bf16.mxu0 0
    %101 = vmatpush1.bf16.msra.mxu0 0
    %102 = vmatprep.subr.bf16.mxu0 0
    %103 = vmatpush1.bf16.msra.mxu0 0
    %104 = vmatprep.subr.bf16.mxu0 0
    %105 = vmatpush1.bf16.msra.mxu0 0
    %106 = vmatprep.subr.bf16.mxu0 0
    %107 = vmatpush1.bf16.msra.mxu0 0
    %108 = vmatprep.subr.bf16.mxu0 0
    %109 = vmatpush1.bf16.msra.mxu0 0
    %110 = vmatprep.subr.bf16.mxu0 0
    %111 = vmatpush1.bf16.msra.mxu0 0
    %112 = vmatprep.subr.bf16.mxu0 0
    %113 = vmatpush1.bf16.msra.mxu0 0
    %114 = vmatprep.subr.bf16.mxu0 0
    %115 = vmatpush1.bf16.msra.mxu0 0
    %116 = vmatprep.mubr.bf16.mxu0 0
    %117 = vmatmul.mubr.bf16.gmra.mrb[0].mxu0 %v82
    %v118 = vpop.f32.mrb[0].mxu0
    %v119 = vadd.f32 %v53, %v118
    %v120 = vpop.f32.mrb[0].mxu0
    %v121 = vadd.f32 %v57, %v120
    %v122 = vpop.f32.mrb[0].mxu0
    %v123 = vpop.f32.mrb[0].mxu0
    %124 = vdwg.mxu0
    %v125 = vmax.f32 %v119, 0.0
    %v126 = vxor.u32 %v121, 2147483648
    %v127 = vmul.f32 %v126, 1.442695
    %v128 = vpow.pop %v127
    %v129 = vadd.f32 %v128, 1.0
    %v130 = vrcp.pop %v129
    %v131 = vmul.f32 1.0, %v130
    %v132 = vsub.f32 %v125, %v42
    %v133 = vmul.f32 %v131, %v132
    %v134 = vadd.f32 %v133, %v42
    %135 = vst.msk [vmem:[#allocation7] sm:$0xff] %vm80, %v134
    // Predicated region
    $region22: #{_highway_forward_2d.1} parent=1 // pred_check
      _
    $region23: #{_highway_forward_2d.1} parent=1 // pred_check_branch
      %137 = sbr.rel (0) target = $region25
    $region24: #{_highway_forward_2d.1} parent=1 // pred_region
      %s139 = ssub.s32 128, 128
      %140 = vsyncadd [#allocation4], %s139
      %s142 = sshll.u32 [#allocation7], 4
      %s143 = int_to_ptr.vmem [resolvable:$true] %s142
      %145 = dma.vmem_to_hbm [thread:$0]  %s143, 128, %s3, [#allocation4]
    $region25: #{_highway_forward_2d.1} parent=1 // pred_fallthru
      _
    // Predicated region
    $region26: #{_highway_forward_2d.1} parent=1 // pred_check
      _
    $region27: #{_highway_forward_2d.1} parent=1 // pred_check_branch
      %147 = sbr.rel (0) target = $region29
    $region28: #{_highway_forward_2d.1} parent=1 // pred_region
      %148 = dma.done [#allocation4], 128
    $region29: #{_highway_forward_2d.1} parent=1 // pred_fallthru
      _
    %149 = vsyncpa [#allocation3], 1
    %150 = vsyncpa [#allocation6], 1
    %151 = vsyncpa [#allocation4], 1

</llo_original>
